<compile_context>
chip_gen: v5e
topology: v5e:2x2
jax: 0.10.0
libtpu: 0.0.40
codegen_flags: <defaults>
</compile_context>

<pallas_src>
import math

import jax
import jax.numpy as jnp
from jax.experimental import pallas as pl
from jax.experimental.pallas import tpu as pltpu


def _round_up(a, b):
    return (a + b - 1) // b * b


def _make_kernel(inv_h):
    def kernel(x_ref, e_ref, g_ref, w_ref, o_ref, acc_ref):
        k = pl.program_id(2)

        @pl.when(k == 0)
        def _init():
            acc_ref[...] = jnp.zeros_like(acc_ref)

        # (x - g)/h == x/h - g/h : grid was pre-scaled in the wrapper,
        # x is scaled here on the small (tm, cf) tile.
        xs = x_ref[...] * inv_h                                    # (tm, cf)

        # Lane-dense expansion on the MXU: xe[:, f*G + j] = xs[:, f].
        # Replaces the (B, in, G) -> (B, in*G) reshape/relayout.
        xe = jnp.dot(xs, e_ref[...],
                     preferred_element_type=jnp.float32)           # (tm, tk)

        d = xe - g_ref[...]                                        # (tm, tk)
        basis = jnp.exp(-(d * d))                                  # f32, EUP

        # bf16 operands, f32 accumulation on the MXU.
        acc_ref[...] += jnp.dot(basis.astype(jnp.bfloat16), w_ref[...],
                                preferred_element_type=jnp.float32)

        @pl.when(k == pl.num_programs(2) - 1)
        def _store():
            o_ref[...] = acc_ref[...].astype(o_ref.dtype)

    return kernel


def gaussian_kernel_forward(x, grid, spline_weight, grid_min, grid_max,
                            *, tm=128, tn=128, max_tk=1024):
    """x: (B, in_features) f32; grid: (num_grids,) f32;
    spline_weight: (in_features * num_grids, out_features) f32."""
    batch, in_features = x.shape
    num_grids = grid.shape[0]
    flat, out_features = spline_weight.shape
    assert flat == in_features * num_grids

    # Grid spacing (static scalar).  Guard the degenerate num_grids == 1 case
    # (the PyTorch module would divide by zero there).
    h = (grid_max - grid_min) / (num_grids - 1) if num_grids > 1 else 1.0
    inv_h = 1.0 / h

    # ---- choose K chunking of the flattened (feature, grid) axis ----------
    # cf features per chunk -> tk = cf * num_grids flattened columns.
    # tk is always a multiple of 128 (lane-dense basis / weight blocks).
    cf_unit = 128 // math.gcd(num_grids, 128)        # min cf with cf*G % 128 == 0
    cf_single = _round_up(in_features, cf_unit)
    if cf_single * num_grids <= max_tk:
        cf = cf_single                               # single K chunk
    else:
        # multi-chunk: cf must itself be a multiple of 128 so the x block
        # (tm, cf) stays lane-aligned.
        cf = 128 * max(1, max_tk // (128 * num_grids))
    tk = cf * num_grids
    in_pad = _round_up(in_features, cf)
    nk = in_pad // cf

    b_pad = _round_up(batch, tm)
    out_pad = _round_up(out_features, tn)
    nb = b_pad // tm
    nn = out_pad // tn

    # ---- pad operands (zero-padded weight rows/cols keep padding inert) ---
    x_p = jnp.zeros((b_pad, in_pad), jnp.float32)
    x_p = x_p.at[:batch, :in_features].set(x.astype(jnp.float32))

    w_p = jnp.zeros((in_pad * num_grids, out_pad), jnp.float32)
    w_p = w_p.at[:flat, :out_features].set(spline_weight.astype(jnp.float32))
    w_bf = w_p.astype(jnp.bfloat16)

    # Pre-scaled grid tiled across the chunk's features: lane-dense (1, tk),
    # column order matches basis.view(B, -1) (feature-major, grid-minor).
    g_tiled = jnp.tile(grid.astype(jnp.float32) * inv_h, cf).reshape(1, tk)

    # One-hot expansion matrix E[f, f*G + j] = 1  (cf, tk); xs @ E places
    # feature f's value in that feature's G-wide lane slab.  Same matrix for
    # every K chunk -> constant index_map, DMA'd once and VMEM-resident.
    E = (jnp.arange(tk, dtype=jnp.int32)[None, :] // num_grids
         == jnp.arange(cf, dtype=jnp.int32)[:, None]).astype(jnp.float32)

    kernel = _make_kernel(inv_h)

    out_padded = pl.pallas_call(
        kernel,
        out_shape=jax.ShapeDtypeStruct((b_pad, out_pad), jnp.float32),
        grid_spec=pltpu.PrefetchScalarGridSpec(
            num_scalar_prefetch=0,
            grid=(nb, nn, nk),
            in_specs=[
                pl.BlockSpec((tm, cf), lambda b, n, k: (b, k)),    # x tile
                pl.BlockSpec((cf, tk), lambda b, n, k: (0, 0)),    # E (resident)
                pl.BlockSpec((1, tk), lambda b, n, k: (0, 0)),     # grid (resident)
                pl.BlockSpec((tk, tn), lambda b, n, k: (k, n)),    # weight chunk
            ],
            out_specs=pl.BlockSpec((tm, tn), lambda b, n, k: (b, n)),
            scratch_shapes=[pltpu.VMEM((tm, tn), jnp.float32)],
        ),
        compiler_params=pltpu.CompilerParams(
            dimension_semantics=("parallel", "parallel", "arbitrary"),
            vmem_limit_bytes=32 * 1024 * 1024,
        ),
    )(x_p, E, g_tiled, w_bf)

    return out_padded[:batch, :out_features]


def gaussian_reference(x, grid, spline_weight, grid_min, grid_max):
    num_grids = grid.shape[0]
    h = (grid_max - grid_min) / (num_grids - 1)
    basis = jnp.exp(-(((x[:, :, None] - grid[None, None, :]) / h) ** 2))
    return basis.reshape(x.shape[0], -1) @ spline_weight


if __name__ == "__main__":
    # Module hyper-parameters (deterministic, small).
    in_features = 16
    out_features = 32
    num_grids = 8
    grid_min, grid_max = -2.0, 2.0
    spline_scale = 0.1
    batch = 8

    key = jax.random.PRNGKey(0)
    kx, kw = jax.random.split(key)

    # Parameters (mirroring the module's __init__ shapes).
    grid_param = jnp.linspace(grid_min, grid_max, num_grids, dtype=jnp.float32)
    spline_weight = (jax.random.normal(
        kw, (in_features * num_grids, out_features), dtype=jnp.float32)
        * spline_scale)

    # Input.
    x = jax.random.normal(kx, (batch, in_features), dtype=jnp.float32)

    out = gaussian_kernel_forward(x, grid_param, spline_weight,
                                  grid_min, grid_max)
    out = jax.block_until_ready(out)

    ref = gaussian_reference(x, grid_param, spline_weight, grid_min, grid_max)
    assert out.shape == (batch, out_features)
    # bf16 MXU operands (f32 accumulate) -> relaxed tolerance vs f32 reference.
    max_err = float(jnp.max(jnp.abs(out - ref)))
    assert jnp.allclose(out, ref, atol=3e-2, rtol=3e-2), (
        f"mismatch vs reference, max abs err = {max_err}")

    print("KERNEL_OK")
</pallas_src>

<mosaic_0001>
module attributes {stable_mosaic.version = 11 : i64} {
  func.func @kernel(%arg0: i32, %arg1: i32, %arg2: i32, %arg3: memref<128x16xf32, #tpu.memory_space<vmem>>, %arg4: memref<16x128xf32, #tpu.memory_space<vmem>>, %arg5: memref<1x128xf32, #tpu.memory_space<vmem>>, %arg6: memref<128x128xbf16, #tpu.memory_space<vmem>>, %arg7: memref<128x128xf32, #tpu.memory_space<vmem>>, %arg8: memref<128x128xf32, #tpu.memory_space<vmem>>) attributes {dimension_semantics = [#tpu.dimension_semantics<parallel>, #tpu.dimension_semantics<parallel>, #tpu.dimension_semantics<arbitrary>], iteration_bounds = array<i64: 1, 1, 1>, scalar_prefetch = 0 : i64, scratch_operands = 1 : i64, tpu.core_type = #tpu.core_type<tc>, window_params = [{transform_indices = @transform_0, window_bounds = array<i64: 128, 16>}, {pipeline_mode = #tpu.pipeline_mode<synchronous>, transform_indices = @transform_1, window_bounds = array<i64: 16, 128>}, {pipeline_mode = #tpu.pipeline_mode<synchronous>, transform_indices = @transform_2, window_bounds = array<i64: 1, 128>}, {transform_indices = @transform_3, window_bounds = array<i64: 128, 128>}, {transform_indices = @transform_4, window_bounds = array<i64: 128, 128>}]} {
    %c0_i32 = arith.constant 0 : i32
    %0 = arith.cmpi eq, %arg2, %c0_i32 : i32
    %1 = arith.extui %0 : i1 to i32
    %c0_i32_0 = arith.constant 0 : i32
    %2 = arith.cmpi ne, %1, %c0_i32_0 : i32
    scf.if %2 {
      %cst_17 = arith.constant 0.000000e+00 : f32
      %24 = vector.broadcast %cst_17 : f32 to vector<128x128xf32>
      %c0_18 = arith.constant 0 : index
      %c0_19 = arith.constant 0 : index
      %25 = vector.load %arg8[%c0_18, %c0_19] : memref<128x128xf32, #tpu.memory_space<vmem>>, vector<128x128xf32>
      tpu.vector_store %arg8[%c0_18, %c0_19], %24 {strides = array<i32>} : memref<128x128xf32, #tpu.memory_space<vmem>>, vector<128x128xf32>,
    } else {
    }
    %c0 = arith.constant 0 : index
    %c0_1 = arith.constant 0 : index
    %3 = vector.load %arg3[%c0, %c0_1] : memref<128x16xf32, #tpu.memory_space<vmem>>, vector<128x16xf32>
    %cst = arith.constant 1.750000e+00 : f32
    %4 = vector.broadcast %cst : f32 to vector<128x16xf32>
    %5 = arith.mulf %3, %4 : vector<128x16xf32>
    %c0_2 = arith.constant 0 : index
    %c0_3 = arith.constant 0 : index
    %6 = vector.load %arg4[%c0_2, %c0_3] : memref<16x128xf32, #tpu.memory_space<vmem>>, vector<16x128xf32>
    %cst_4 = arith.constant dense<0.000000e+00> : vector<128x128xf32>
    %7 = tpu.matmul %5, %6, %cst_4 {dimension_numbers = #tpu.dot_dimension_numbers<[1], [0], [0], [1], [0, 0, 1, 1], [], []>} : vector<128x16xf32>, vector<16x128xf32>, vector<128x128xf32> -> vector<128x128xf32>
    %c0_5 = arith.constant 0 : index
    %c0_6 = arith.constant 0 : index
    %8 = vector.load %arg5[%c0_5, %c0_6] : memref<1x128xf32, #tpu.memory_space<vmem>>, vector<1x128xf32>
    %9 = vector.broadcast %8 : vector<1x128xf32> to vector<128x128xf32>
    %10 = arith.subf %7, %9 : vector<128x128xf32>
    %11 = arith.mulf %10, %10 : vector<128x128xf32>
    %cst_7 = arith.constant 0.000000e+00 : f32
    %12 = vector.broadcast %cst_7 : f32 to vector<128x128xf32>
    %13 = arith.subf %12, %11 : vector<128x128xf32>
    %14 = math.exp %13 : vector<128x128xf32>
    %c0_8 = arith.constant 0 : index
    %c0_9 = arith.constant 0 : index
    %15 = vector.load %arg8[%c0_8, %c0_9] : memref<128x128xf32, #tpu.memory_space<vmem>>, vector<128x128xf32>
    %16 = arith.truncf %14 : vector<128x128xf32> to vector<128x128xbf16>
    %c0_10 = arith.constant 0 : index
    %c0_11 = arith.constant 0 : index
    %17 = vector.load %arg6[%c0_10, %c0_11] : memref<128x128xbf16, #tpu.memory_space<vmem>>, vector<128x128xbf16>
    %cst_12 = arith.constant dense<0.000000e+00> : vector<128x128xf32>
    %18 = tpu.matmul %16, %17, %cst_12 {dimension_numbers = #tpu.dot_dimension_numbers<[1], [0], [0], [1], [0, 0, 1, 1], [], []>} : vector<128x128xbf16>, vector<128x128xbf16>, vector<128x128xf32> -> vector<128x128xf32>
    %19 = arith.addf %15, %18 : vector<128x128xf32>
    %c0_13 = arith.constant 0 : index
    %c0_14 = arith.constant 0 : index
    %20 = vector.load %arg8[%c0_13, %c0_14] : memref<128x128xf32, #tpu.memory_space<vmem>>, vector<128x128xf32>
    tpu.vector_store %arg8[%c0_13, %c0_14], %19 {strides = array<i32>} : memref<128x128xf32, #tpu.memory_space<vmem>>, vector<128x128xf32>,
    %c0_i32_15 = arith.constant 0 : i32
    %21 = arith.cmpi eq, %arg2, %c0_i32_15 : i32
    %22 = arith.extui %21 : i1 to i32
    %c0_i32_16 = arith.constant 0 : i32
    %23 = arith.cmpi ne, %22, %c0_i32_16 : i32
    scf.if %23 {
      %c0_17 = arith.constant 0 : index
      %c0_18 = arith.constant 0 : index
      %24 = vector.load %arg8[%c0_17, %c0_18] : memref<128x128xf32, #tpu.memory_space<vmem>>, vector<128x128xf32>
      %c0_19 = arith.constant 0 : index
      %c0_20 = arith.constant 0 : index
      %25 = vector.load %arg7[%c0_19, %c0_20] : memref<128x128xf32, #tpu.memory_space<vmem>>, vector<128x128xf32>
      tpu.vector_store %arg7[%c0_19, %c0_20], %24 {strides = array<i32>} : memref<128x128xf32, #tpu.memory_space<vmem>>, vector<128x128xf32>,
    } else {
    }
    return
  }
  func.func @transform_0(%arg0: i32, %arg1: i32, %arg2: i32) -> (i32, i32) {
    %c0_i32 = arith.constant 0 : i32
    return %arg0, %arg2 : i32, i32
  }
  func.func @transform_1(%arg0: i32, %arg1: i32, %arg2: i32) -> (i32, i32) {
    %c0_i32 = arith.constant 0 : i32
    %c0_i32_0 = arith.constant 0 : i32
    %c0_i32_1 = arith.constant 0 : i32
    return %c0_i32, %c0_i32_0 : i32, i32
  }
  func.func @transform_2(%arg0: i32, %arg1: i32, %arg2: i32) -> (i32, i32) {
    %c0_i32 = arith.constant 0 : i32
    %c0_i32_0 = arith.constant 0 : i32
    %c0_i32_1 = arith.constant 0 : i32
    return %c0_i32, %c0_i32_0 : i32, i32
  }
  func.func @transform_3(%arg0: i32, %arg1: i32, %arg2: i32) -> (i32, i32) {
    %c0_i32 = arith.constant 0 : i32
    return %arg2, %arg1 : i32, i32
  }
  func.func @transform_4(%arg0: i32, %arg1: i32, %arg2: i32) -> (i32, i32) {
    %c0_i32 = arith.constant 0 : i32
    return %arg0, %arg1 : i32, i32
  }
}

</mosaic_0001>

<llo_original>
// kernel: tpu_custom_call.1
$region0: #{tpu_custom_call.1}
  #allocation0 [shape = 'u32[]', space=smem, size = 0x4, offset = 0x4, fixed_abs, tag = 'smem constant byte address 0x4 - core index']
  #allocation1 [shape = 'u32[72,128]{1,0:T(1,128)}', space=vmem, size = 0x9000, scoped, tag = 'internal scratch']
  #allocation2 [shape = 'f32[128,128]{1,0:T(8,128)}', space=vmem, size = 0x10000, scoped, tag = 'scratch operand']
  %s0 = inlined_call_operand.vmem [shape: f32[128,16], index: 0, kind: input, shape index: {}]
  %s1 = inlined_call_operand.vmem [shape: f32[16,128], index: 1, kind: input, shape index: {}]
  %s2 = inlined_call_operand.vmem [shape: f32[1,128], index: 2, kind: input, shape index: {}]
  %s3 = inlined_call_operand.vmem [shape: bf16[128,128], index: 3, kind: input, shape index: {}]
  %s4 = inlined_call_operand.hbm [shape: f32[128,128], index: 4, kind: output, shape index: {}]
  %s5 = sld [smem:[#allocation0]]
  $region34: #{tpu_custom_call.1} parent=0
    _
  %s7 = ssub.s32 1, %s5
  %s8 = scalar_select 0, %s7, %s5
  $region1: #{tpu_custom_call.1} parent=0
    #allocation3 [shape = 'u8[65536]{0}', space=vmem, size = 0x10000, scoped, tag = 'output window, operand 0, single buffered']
    #allocation4 [shape = 's32[1]{0}', space=sflag, size = 0x4, scoped, tag = 'scoped memory for tpu_custom_call.1']
    %9 = vsyncpa [#allocation4], 0
    // Predicated region
    $region2: #{tpu_custom_call.1} parent=1 // pred_check
      _
    $region3: #{tpu_custom_call.1} parent=1 // pred_check_branch
      %11 = sbr.rel (0) target = $region5
    $region4: #{tpu_custom_call.1} parent=1 // pred_region
      _
    $region5: #{tpu_custom_call.1} parent=1 // pred_fallthru
      _
    // Predicated region
    $region6: #{tpu_custom_call.1} parent=1 // pred_check
      _
    $region7: #{tpu_custom_call.1} parent=1 // pred_check_branch
      %13 = sbr.rel (0) target = $region9
    $region8: #{tpu_custom_call.1} parent=1 // pred_region
      _
    $region9: #{tpu_custom_call.1} parent=1 // pred_fallthru
      _
    // Predicated region
    $region10: #{tpu_custom_call.1} parent=1 // pred_check
      _
    $region11: #{tpu_custom_call.1} parent=1 // pred_check_branch
      %15 = sbr.rel (0) target = $region13
    $region12: #{tpu_custom_call.1} parent=1 // pred_region
      _
    $region13: #{tpu_custom_call.1} parent=1 // pred_fallthru
      _
    // Predicated region
    $region14: #{tpu_custom_call.1} parent=1 // pred_check
      _
    $region15: #{tpu_custom_call.1} parent=1 // pred_check_branch
      %17 = sbr.rel (0) target = $region17
    $region16: #{tpu_custom_call.1} parent=1 // pred_region
      _
    $region17: #{tpu_custom_call.1} parent=1 // pred_fallthru
      _
    %p18 = scmp.eq.s32.totalorder 0, 0
    // Predicated region
    $region18: #{tpu_custom_call.1} parent=1 // pred_check
      %p19 = pneg %p18
    $region19: #{tpu_custom_call.1} parent=1 // pred_check_branch
      %21 = sbr.rel (%p19) target = $region21
    $region20: #{tpu_custom_call.1} parent=1 // pred_region
      %22 = vst [vmem:[#allocation2] sm:$0xff] 0.0
      %23 = vst [vmem:[#allocation2 + $0x8] sm:$0xff] 0.0
      %24 = vst [vmem:[#allocation2 + $0x10] sm:$0xff] 0.0
      %25 = vst [vmem:[#allocation2 + $0x18] sm:$0xff] 0.0
      %26 = vst [vmem:[#allocation2 + $0x20] sm:$0xff] 0.0
      %27 = vst [vmem:[#allocation2 + $0x28] sm:$0xff] 0.0
      %28 = vst [vmem:[#allocation2 + $0x30] sm:$0xff] 0.0
      %29 = vst [vmem:[#allocation2 + $0x38] sm:$0xff] 0.0
      %30 = vst [vmem:[#allocation2 + $0x40] sm:$0xff] 0.0
      %31 = vst [vmem:[#allocation2 + $0x48] sm:$0xff] 0.0
      %32 = vst [vmem:[#allocation2 + $0x50] sm:$0xff] 0.0
      %33 = vst [vmem:[#allocation2 + $0x58] sm:$0xff] 0.0
      %34 = vst [vmem:[#allocation2 + $0x60] sm:$0xff] 0.0
      %35 = vst [vmem:[#allocation2 + $0x68] sm:$0xff] 0.0
      %36 = vst [vmem:[#allocation2 + $0x70] sm:$0xff] 0.0
      %37 = vst [vmem:[#allocation2 + $0x78] sm:$0xff] 0.0
    $region21: #{tpu_custom_call.1} parent=1 // pred_fallthru
      _
    %v38 = vld [vmem:[%s0] sm:$0xff]
    %v39 = vld [vmem:[%s0 + $0x8] sm:$0xff]
    %v40 = vld [vmem:[%s0 + $0x10] sm:$0xff]
    %v41 = vld [vmem:[%s0 + $0x18] sm:$0xff]
    %v42 = vld [vmem:[%s0 + $0x20] sm:$0xff]
    %v43 = vld [vmem:[%s0 + $0x28] sm:$0xff]
    %v44 = vld [vmem:[%s0 + $0x30] sm:$0xff]
    %v45 = vld [vmem:[%s0 + $0x38] sm:$0xff]
    %v46 = vld [vmem:[%s0 + $0x40] sm:$0xff]
    %v47 = vld [vmem:[%s0 + $0x48] sm:$0xff]
    %v48 = vld [vmem:[%s0 + $0x50] sm:$0xff]
    %v49 = vld [vmem:[%s0 + $0x58] sm:$0xff]
    %v50 = vld [vmem:[%s0 + $0x60] sm:$0xff]
    %v51 = vld [vmem:[%s0 + $0x68] sm:$0xff]
    %v52 = vld [vmem:[%s0 + $0x70] sm:$0xff]
    %v53 = vld [vmem:[%s0 + $0x78] sm:$0xff]
    %v54 = vmul.f32 %v38, 1.75
    %v55 = vmul.f32 %v39, 1.75
    %v56 = vmul.f32 %v40, 1.75
    %v57 = vmul.f32 %v41, 1.75
    %v58 = vmul.f32 %v42, 1.75
    %v59 = vmul.f32 %v43, 1.75
    %v60 = vmul.f32 %v44, 1.75
    %v61 = vmul.f32 %v45, 1.75
    %v62 = vmul.f32 %v46, 1.75
    %v63 = vmul.f32 %v47, 1.75
    %v64 = vmul.f32 %v48, 1.75
    %v65 = vmul.f32 %v49, 1.75
    %v66 = vmul.f32 %v50, 1.75
    %v67 = vmul.f32 %v51, 1.75
    %v68 = vmul.f32 %v52, 1.75
    %v69 = vmul.f32 %v53, 1.75
    %v70 = vld [vmem:[%s1] sm:$0xff]
    %v71 = vld [vmem:[%s1 + $0x8] sm:$0xff]
    %vm72 = vcmask 130048
    %v74 = vsel %vm72, %v54, 0
    %v77 = vsel %vm72, %v55, 0
    %v80 = vsel %vm72, %v56, 0
    %v83 = vsel %vm72, %v57, 0
    %v86 = vsel %vm72, %v58, 0
    %v89 = vsel %vm72, %v59, 0
    %v92 = vsel %vm72, %v60, 0
    %v95 = vsel %vm72, %v61, 0
    %v98 = vsel %vm72, %v62, 0
    %v101 = vsel %vm72, %v63, 0
    %v104 = vsel %vm72, %v64, 0
    %v107 = vsel %vm72, %v65, 0
    %v110 = vsel %vm72, %v66, 0
    %v113 = vsel %vm72, %v67, 0
    %v116 = vsel %vm72, %v68, 0
    %v119 = vsel %vm72, %v69, 0
    %121 = vmatpush.msra.mxu0 0.0
    %122 = vmatpush.msra.mxu0 0.0
    %123 = vmatpush.msra.mxu0 0.0
    %124 = vmatpush.msra.mxu0 0.0
    %125 = vmatpush.msra.mxu0 0.0
    %126 = vmatpush.msra.mxu0 0.0
    %127 = vmatpush.msra.mxu0 0.0
    %128 = vmatpush.msra.mxu0 0.0
    %129 = vmatpush.msra.mxu0 0.0
    %130 = vmatpush.msra.mxu0 0.0
    %131 = vmatpush.msra.mxu0 0.0
    %132 = vmatpush.msra.mxu0 0.0
    %133 = vmatpush.msra.mxu0 0.0
    %134 = vmatpush.msra.mxu0 0.0
    %135 = vmatpush.msra.mxu0 %v71
    %136 = vmatpush.msra.mxu0 %v70
    %137 = vmatmul.f32.gmra.mxu0 %v74
    %v138 = vpop.f32.mrf.mxu0
    %v139 = vadd.f32 0.0, %v138
    %140 = vmatmul.f32.gmra.mxu0 %v77
    %v141 = vpop.f32.mrf.mxu0
    %v142 = vadd.f32 0.0, %v141
    %143 = vmatmul.f32.gmra.mxu0 %v80
    %v144 = vpop.f32.mrf.mxu0
    %v145 = vadd.f32 0.0, %v144
    %146 = vmatmul.f32.gmra.mxu0 %v83
    %v147 = vpop.f32.mrf.mxu0
    %v148 = vadd.f32 0.0, %v147
    %149 = vmatmul.f32.gmra.mxu0 %v86
    %v150 = vpop.f32.mrf.mxu0
    %v151 = vadd.f32 0.0, %v150
    %152 = vmatmul.f32.gmra.mxu0 %v89
    %v153 = vpop.f32.mrf.mxu0
    %v154 = vadd.f32 0.0, %v153
    %155 = vmatmul.f32.gmra.mxu0 %v92
    %v156 = vpop.f32.mrf.mxu0
    %v157 = vadd.f32 0.0, %v156
    %158 = vmatmul.f32.gmra.mxu0 %v95
    %v159 = vpop.f32.mrf.mxu0
    %v160 = vadd.f32 0.0, %v159
    %161 = vmatmul.f32.gmra.mxu0 %v98
    %v162 = vpop.f32.mrf.mxu0
    %v163 = vadd.f32 0.0, %v162
    %164 = vmatmul.f32.gmra.mxu0 %v101
    %v165 = vpop.f32.mrf.mxu0
    %v166 = vadd.f32 0.0, %v165
    %167 = vmatmul.f32.gmra.mxu0 %v104
    %v168 = vpop.f32.mrf.mxu0
    %v169 = vadd.f32 0.0, %v168
    %170 = vmatmul.f32.gmra.mxu0 %v107
    %v171 = vpop.f32.mrf.mxu0
    %v172 = vadd.f32 0.0, %v171
    %173 = vmatmul.f32.gmra.mxu0 %v110
    %v174 = vpop.f32.mrf.mxu0
    %v175 = vadd.f32 0.0, %v174
    %176 = vmatmul.f32.gmra.mxu0 %v113
    %v177 = vpop.f32.mrf.mxu0
    %v178 = vadd.f32 0.0, %v177
    %179 = vmatmul.f32.gmra.mxu0 %v116
    %v180 = vpop.f32.mrf.mxu0
    %v181 = vadd.f32 0.0, %v180
    %182 = vmatmul.f32.gmra.mxu0 %v119
    %v183 = vpop.f32.mrf.mxu0
    %v184 = vadd.f32 0.0, %v183
    %185 = vdwg.mxu0
    %v186 = vld [vmem:[%s2] sm:$0x1]
    %v188 = vperm.slane %v186, 0
    %v190 = vsub.f32 %v139, %v188
    %v191 = vsub.f32 %v142, %v188
    %v192 = vsub.f32 %v145, %v188
    %v193 = vsub.f32 %v148, %v188
    %v194 = vsub.f32 %v151, %v188
    %v195 = vsub.f32 %v154, %v188
    %v196 = vsub.f32 %v157, %v188
    %v197 = vsub.f32 %v160, %v188
    %v198 = vsub.f32 %v163, %v188
    %v199 = vsub.f32 %v166, %v188
    %v200 = vsub.f32 %v169, %v188
    %v201 = vsub.f32 %v172, %v188
    %v202 = vsub.f32 %v175, %v188
    %v203 = vsub.f32 %v178, %v188
    %v204 = vsub.f32 %v181, %v188
    %v205 = vsub.f32 %v184, %v188
    %v206 = vmul.f32 %v190, %v190
    %v207 = vmul.f32 %v191, %v191
    %v208 = vmul.f32 %v192, %v192
    %v209 = vmul.f32 %v193, %v193
    %v210 = vmul.f32 %v194, %v194
    %v211 = vmul.f32 %v195, %v195
    %v212 = vmul.f32 %v196, %v196
    %v213 = vmul.f32 %v197, %v197
    %v214 = vmul.f32 %v198, %v198
    %v215 = vmul.f32 %v199, %v199
    %v216 = vmul.f32 %v200, %v200
    %v217 = vmul.f32 %v201, %v201
    %v218 = vmul.f32 %v202, %v202
    %v219 = vmul.f32 %v203, %v203
    %v220 = vmul.f32 %v204, %v204
    %v221 = vmul.f32 %v205, %v205
    %v222 = vsub.f32 0.0, %v206
    %v223 = vsub.f32 0.0, %v207
    %v224 = vsub.f32 0.0, %v208
    %v225 = vsub.f32 0.0, %v209
    %v226 = vsub.f32 0.0, %v210
    %v227 = vsub.f32 0.0, %v211
    %v228 = vsub.f32 0.0, %v212
    %v229 = vsub.f32 0.0, %v213
    %v230 = vsub.f32 0.0, %v214
    %v231 = vsub.f32 0.0, %v215
    %v232 = vsub.f32 0.0, %v216
    %v233 = vsub.f32 0.0, %v217
    %v234 = vsub.f32 0.0, %v218
    %v235 = vsub.f32 0.0, %v219
    %v236 = vsub.f32 0.0, %v220
    %v237 = vsub.f32 0.0, %v221
    %v238 = vmul.f32 %v222, 1.442695
    %v239 = vpow.pop %v238
    %v240 = vmul.f32 %v223, 1.442695
    %v241 = vpow.pop %v240
    %v242 = vmul.f32 %v224, 1.442695
    %v243 = vpow.pop %v242
    %v244 = vmul.f32 %v225, 1.442695
    %v245 = vpow.pop %v244
    %v246 = vmul.f32 %v226, 1.442695
    %v247 = vpow.pop %v246
    %v248 = vmul.f32 %v227, 1.442695
    %v249 = vpow.pop %v248
    %v250 = vmul.f32 %v228, 1.442695
    %v251 = vpow.pop %v250
    %v252 = vmul.f32 %v229, 1.442695
    %v253 = vpow.pop %v252
    %v254 = vmul.f32 %v230, 1.442695
    %v255 = vpow.pop %v254
    %v256 = vmul.f32 %v231, 1.442695
    %v257 = vpow.pop %v256
    %v258 = vmul.f32 %v232, 1.442695
    %v259 = vpow.pop %v258
    %v260 = vmul.f32 %v233, 1.442695
    %v261 = vpow.pop %v260
    %v262 = vmul.f32 %v234, 1.442695
    %v263 = vpow.pop %v262
    %v264 = vmul.f32 %v235, 1.442695
    %v265 = vpow.pop %v264
    %v266 = vmul.f32 %v236, 1.442695
    %v267 = vpow.pop %v266
    %v268 = vmul.f32 %v237, 1.442695
    %v269 = vpow.pop %v268
    %v270 = vld [vmem:[#allocation2] sm:$0xff]
    %v271 = vld [vmem:[#allocation2 + $0x8] sm:$0xff]
    %v272 = vld [vmem:[#allocation2 + $0x10] sm:$0xff]
    %v273 = vld [vmem:[#allocation2 + $0x18] sm:$0xff]
    %v274 = vld [vmem:[#allocation2 + $0x20] sm:$0xff]
    %v275 = vld [vmem:[#allocation2 + $0x28] sm:$0xff]
    %v276 = vld [vmem:[#allocation2 + $0x30] sm:$0xff]
    %v277 = vld [vmem:[#allocation2 + $0x38] sm:$0xff]
    %v278 = vld [vmem:[#allocation2 + $0x40] sm:$0xff]
    %v279 = vld [vmem:[#allocation2 + $0x48] sm:$0xff]
    %v280 = vld [vmem:[#allocation2 + $0x50] sm:$0xff]
    %v281 = vld [vmem:[#allocation2 + $0x58] sm:$0xff]
    %v282 = vld [vmem:[#allocation2 + $0x60] sm:$0xff]
    %v283 = vld [vmem:[#allocation2 + $0x68] sm:$0xff]
    %v284 = vld [vmem:[#allocation2 + $0x70] sm:$0xff]
    %v285 = vld [vmem:[#allocation2 + $0x78] sm:$0xff]
    %v286 = vpack.c.bf16 %v241, %v239
    %v287 = vpack.c.bf16 %v245, %v243
    %v288 = vpack.c.bf16 %v249, %v247
    %v289 = vpack.c.bf16 %v253, %v251
    %v290 = vpack.c.bf16 %v257, %v255
    %v291 = vpack.c.bf16 %v261, %v259
    %v292 = vpack.c.bf16 %v265, %v263
    %v293 = vpack.c.bf16 %v269, %v267
    %v294 = vld [vmem:[%s3] sm:$0xf]
    %v295 = vld [vmem:[%s3 + $0x4] sm:$0xf]
    %v296 = vld [vmem:[%s3 + $0x8] sm:$0xf]
    %v297 = vld [vmem:[%s3 + $0xc] sm:$0xf]
    %v298 = vld [vmem:[%s3 + $0x10] sm:$0xf]
    %v299 = vld [vmem:[%s3 + $0x14] sm:$0xf]
    %v300 = vld [vmem:[%s3 + $0x18] sm:$0xf]
    %v301 = vld [vmem:[%s3 + $0x1c] sm:$0xf]
    %v302 = vld [vmem:[%s3 + $0x20] sm:$0xf]
    %v303 = vld [vmem:[%s3 + $0x24] sm:$0xf]
    %v304 = vld [vmem:[%s3 + $0x28] sm:$0xf]
    %v305 = vld [vmem:[%s3 + $0x2c] sm:$0xf]
    %v306 = vld [vmem:[%s3 + $0x30] sm:$0xf]
    %v307 = vld [vmem:[%s3 + $0x34] sm:$0xf]
    %v308 = vld [vmem:[%s3 + $0x38] sm:$0xf]
    %v309 = vld [vmem:[%s3 + $0x3c] sm:$0xf]
    %v326 = vunpack.c.l.b16 %v294
    %v327 = vunpack.c.l.b16 %v295
    %v328 = vunpack.c.l.b16 %v296
    %v329 = vunpack.c.l.b16 %v297
    %v330 = vunpack.c.l.b16 %v298
    %v331 = vunpack.c.l.b16 %v299
    %v332 = vunpack.c.l.b16 %v300
    %v333 = vunpack.c.l.b16 %v301
    %v334 = vunpack.c.l.b16 %v302
    %v335 = vunpack.c.l.b16 %v303
    %v336 = vunpack.c.l.b16 %v304
    %v337 = vunpack.c.l.b16 %v305
    %v338 = vunpack.c.l.b16 %v306
    %v339 = vunpack.c.l.b16 %v307
    %v340 = vunpack.c.l.b16 %v308
    %v341 = vunpack.c.l.b16 %v309
    %v342 = vpack.c.b16 %v327, %v326
    %v343 = vpack.c.b16 %v329, %v328
    %v344 = vpack.c.b16 %v331, %v330
    %v345 = vpack.c.b16 %v333, %v332
    %v346 = vpack.c.b16 %v335, %v334
    %v347 = vpack.c.b16 %v337, %v336
    %v348 = vpack.c.b16 %v339, %v338
    %v349 = vpack.c.b16 %v341, %v340
    %358 = vmatpush.bf16.msra.mxu0 %v349
    %359 = vmatpush.bf16.msra.mxu0 %v348
    %360 = vmatpush.bf16.msra.mxu0 %v347
    %361 = vmatpush.bf16.msra.mxu0 %v346
    %362 = vmatpush.bf16.msra.mxu0 %v345
    %363 = vmatpush.bf16.msra.mxu0 %v344
    %364 = vmatpush.bf16.msra.mxu0 %v343
    %365 = vmatpush.bf16.msra.mxu0 %v342
    %366 = vmatmul.bf16.gmra.mxu0 %v286
    %v367 = vpop.f32.mrf.mxu0
    %v368 = vadd.f32 0.0, %v367
    %v369 = vpop.f32.mrf.mxu0
    %v370 = vadd.f32 0.0, %v369
    %371 = vmatmul.bf16.gmra.mxu0 %v287
    %v372 = vpop.f32.mrf.mxu0
    %v373 = vadd.f32 0.0, %v372
    %v374 = vpop.f32.mrf.mxu0
    %v375 = vadd.f32 0.0, %v374
    %376 = vmatmul.bf16.gmra.mxu0 %v288
    %v377 = vpop.f32.mrf.mxu0
    %v378 = vadd.f32 0.0, %v377
    %v379 = vpop.f32.mrf.mxu0
    %v380 = vadd.f32 0.0, %v379
    %381 = vmatmul.bf16.gmra.mxu0 %v289
    %v382 = vpop.f32.mrf.mxu0
    %v383 = vadd.f32 0.0, %v382
    %v384 = vpop.f32.mrf.mxu0
    %v385 = vadd.f32 0.0, %v384
    %386 = vmatmul.bf16.gmra.mxu0 %v290
    %v387 = vpop.f32.mrf.mxu0
    %v388 = vadd.f32 0.0, %v387
    %v389 = vpop.f32.mrf.mxu0
    %v390 = vadd.f32 0.0, %v389
    %391 = vmatmul.bf16.gmra.mxu0 %v291
    %v392 = vpop.f32.mrf.mxu0
    %v393 = vadd.f32 0.0, %v392
    %v394 = vpop.f32.mrf.mxu0
    %v395 = vadd.f32 0.0, %v394
    %396 = vmatmul.bf16.gmra.mxu0 %v292
    %v397 = vpop.f32.mrf.mxu0
    %v398 = vadd.f32 0.0, %v397
    %v399 = vpop.f32.mrf.mxu0
    %v400 = vadd.f32 0.0, %v399
    %401 = vmatmul.bf16.gmra.mxu0 %v293
    %v402 = vpop.f32.mrf.mxu0
    %v403 = vadd.f32 0.0, %v402
    %v404 = vpop.f32.mrf.mxu0
    %v405 = vadd.f32 0.0, %v404
    %406 = vdwg.mxu0
    %v407 = vadd.f32 %v270, %v368
    %v408 = vadd.f32 %v271, %v370
    %v409 = vadd.f32 %v272, %v373
    %v410 = vadd.f32 %v273, %v375
    %v411 = vadd.f32 %v274, %v378
    %v412 = vadd.f32 %v275, %v380
    %v413 = vadd.f32 %v276, %v383
    %v414 = vadd.f32 %v277, %v385
    %v415 = vadd.f32 %v278, %v388
    %v416 = vadd.f32 %v279, %v390
    %v417 = vadd.f32 %v280, %v393
    %v418 = vadd.f32 %v281, %v395
    %v419 = vadd.f32 %v282, %v398
    %v420 = vadd.f32 %v283, %v400
    %v421 = vadd.f32 %v284, %v403
    %v422 = vadd.f32 %v285, %v405
    %423 = vst [vmem:[#allocation2] sm:$0xff] %v407
    %424 = vst [vmem:[#allocation2 + $0x8] sm:$0xff] %v408
    %425 = vst [vmem:[#allocation2 + $0x10] sm:$0xff] %v409
    %426 = vst [vmem:[#allocation2 + $0x18] sm:$0xff] %v410
    %427 = vst [vmem:[#allocation2 + $0x20] sm:$0xff] %v411
    %428 = vst [vmem:[#allocation2 + $0x28] sm:$0xff] %v412
    %429 = vst [vmem:[#allocation2 + $0x30] sm:$0xff] %v413
    %430 = vst [vmem:[#allocation2 + $0x38] sm:$0xff] %v414
    %431 = vst [vmem:[#allocation2 + $0x40] sm:$0xff] %v415
    %432 = vst [vmem:[#allocation2 + $0x48] sm:$0xff] %v416
    %433 = vst [vmem:[#allocation2 + $0x50] sm:$0xff] %v417
    %434 = vst [vmem:[#allocation2 + $0x58] sm:$0xff] %v418
    %435 = vst [vmem:[#allocation2 + $0x60] sm:$0xff] %v419
    %436 = vst [vmem:[#allocation2 + $0x68] sm:$0xff] %v420
    %437 = vst [vmem:[#allocation2 + $0x70] sm:$0xff] %v421
    %438 = vst [vmem:[#allocation2 + $0x78] sm:$0xff] %v422
    // Predicated region
    $region22: #{tpu_custom_call.1} parent=1 // pred_check
      %p439 = pneg %p18
    $region23: #{tpu_custom_call.1} parent=1 // pred_check_branch
      %441 = sbr.rel (%p439) target = $region25
    $region24: #{tpu_custom_call.1} parent=1 // pred_region
      %v442 = vld [vmem:[#allocation2] sm:$0xff]
      %v443 = vld [vmem:[#allocation2 + $0x8] sm:$0xff]
      %v444 = vld [vmem:[#allocation2 + $0x10] sm:$0xff]
      %v445 = vld [vmem:[#allocation2 + $0x18] sm:$0xff]
      %v446 = vld [vmem:[#allocation2 + $0x20] sm:$0xff]
      %v447 = vld [vmem:[#allocation2 + $0x28] sm:$0xff]
      %v448 = vld [vmem:[#allocation2 + $0x30] sm:$0xff]
      %v449 = vld [vmem:[#allocation2 + $0x38] sm:$0xff]
      %v450 = vld [vmem:[#allocation2 + $0x40] sm:$0xff]
      %v451 = vld [vmem:[#allocation2 + $0x48] sm:$0xff]
      %v452 = vld [vmem:[#allocation2 + $0x50] sm:$0xff]
      %v453 = vld [vmem:[#allocation2 + $0x58] sm:$0xff]
      %v454 = vld [vmem:[#allocation2 + $0x60] sm:$0xff]
      %v455 = vld [vmem:[#allocation2 + $0x68] sm:$0xff]
      %v456 = vld [vmem:[#allocation2 + $0x70] sm:$0xff]
      %v457 = vld [vmem:[#allocation2 + $0x78] sm:$0xff]
      %458 = vst [vmem:[#allocation3] sm:$0xff] %v442
      %459 = vst [vmem:[#allocation3 + $0x8] sm:$0xff] %v443
      %460 = vst [vmem:[#allocation3 + $0x10] sm:$0xff] %v444
      %461 = vst [vmem:[#allocation3 + $0x18] sm:$0xff] %v445
      %462 = vst [vmem:[#allocation3 + $0x20] sm:$0xff] %v446
      %463 = vst [vmem:[#allocation3 + $0x28] sm:$0xff] %v447
      %464 = vst [vmem:[#allocation3 + $0x30] sm:$0xff] %v448
      %465 = vst [vmem:[#allocation3 + $0x38] sm:$0xff] %v449
      %466 = vst [vmem:[#allocation3 + $0x40] sm:$0xff] %v450
      %467 = vst [vmem:[#allocation3 + $0x48] sm:$0xff] %v451
      %468 = vst [vmem:[#allocation3 + $0x50] sm:$0xff] %v452
      %469 = vst [vmem:[#allocation3 + $0x58] sm:$0xff] %v453
      %470 = vst [vmem:[#allocation3 + $0x60] sm:$0xff] %v454
      %471 = vst [vmem:[#allocation3 + $0x68] sm:$0xff] %v455
      %472 = vst [vmem:[#allocation3 + $0x70] sm:$0xff] %v456
      %473 = vst [vmem:[#allocation3 + $0x78] sm:$0xff] %v457
    $region25: #{tpu_custom_call.1} parent=1 // pred_fallthru
      _
    // Predicated region
    $region26: #{tpu_custom_call.1} parent=1 // pred_check
      _
    $region27: #{tpu_custom_call.1} parent=1 // pred_check_branch
      %475 = sbr.rel (0) target = $region29
    $region28: #{tpu_custom_call.1} parent=1 // pred_region
      %477 = vsyncadd [#allocation4], 0
      %s478 = sshll.u32 [#allocation3], 4
      %s479 = int_to_ptr.vmem [resolvable:$true] %s478
      %s480 = sshll.u32 %s4, 4
      %s481 = int_to_ptr.hbm [resolvable:$true] %s480
      %486 = dma.vmem_to_hbm [thread:$0]  %s479, 2048, %s481, [#allocation4], 128, 128, 8
    $region29: #{tpu_custom_call.1} parent=1 // pred_fallthru
      _
    // Predicated region
    $region30: #{tpu_custom_call.1} parent=1 // pred_check
      _
    $region31: #{tpu_custom_call.1} parent=1 // pred_check_branch
      %488 = sbr.rel (0) target = $region33
    $region32: #{tpu_custom_call.1} parent=1 // pred_region
      %490 = dma.done [#allocation4], 2048
    $region33: #{tpu_custom_call.1} parent=1 // pred_fallthru
      _
    %491 = vsyncpa [#allocation4], 1

</llo_original>
